<compile_context>
chip_gen: v7x
topology: tpu7x:2x2x1
jax: 0.10.0
libtpu: 0.0.40
codegen_flags: <defaults>
</compile_context>

<pallas_src>
import functools

import jax
import jax.numpy as jnp
import numpy as np
from jax.experimental import pallas as pl
from jax.experimental.pallas import tpu as pltpu


@functools.lru_cache(maxsize=None)
def _bilinear_2x_matrix(size_in: int) -> np.ndarray:
    """(2*size_in, size_in) matrix implementing PyTorch's
    Upsample(scale_factor=2, mode='bilinear', align_corners=False) along one axis.
    Built with numpy -> trace-time constant, cached, never re-materialized per call."""
    size_out = 2 * size_in
    i = np.arange(size_out, dtype=np.float64)
    src = np.maximum((i + 0.5) / 2.0 - 0.5, 0.0)       # PyTorch clamps negative source coords
    i0 = np.floor(src).astype(np.int64)
    frac = src - i0
    i1 = np.minimum(i0 + 1, size_in - 1)
    u = np.zeros((size_out, size_in), np.float64)
    np.add.at(u, (np.arange(size_out), i0), 1.0 - frac)   # double-add at clamped edges sums to 1
    np.add.at(u, (np.arange(size_out), i1), frac)
    return u


def _upsample_conv_kernel(w_ref, x_ref, uh_ref, uwt_ref, o_ref):
    """One batch element per grid step.

    w_ref   : SMEM (Cout, Cin) f32        -- 1x1 conv weights, read as scalars
    x_ref   : VMEM (1, Cin, H, W)         -- input image (caller dtype)
    uh_ref  : VMEM (Ho, H)      bf16      -- height interpolation matrix (resident)
    uwt_ref : VMEM (W, Wo_pad)  bf16      -- width interpolation matrix, transposed + lane-padded
    o_ref   : VMEM (1, Cout*Ho, Wo_pad)   -- output rows flattened over (o, ho)
    """
    cout, cin = w_ref.shape
    uh = uh_ref[...]                                    # (Ho, H)      bf16
    uwt = uwt_ref[...]                                  # (W, Wo_pad)  bf16
    mxu_dtype = uh.dtype

    # Hoist the input load / f32 promotion out of the channel loops.
    xs = [x_ref[0, c].astype(jnp.float32) for c in range(cin)]     # Cin x (H, W) f32

    z_rows = []
    for o in range(cout):
        # 1) 1x1 conv at LOW resolution (conv-first): VPU scalar FMAs, f32 accumulation.
        acc = xs[0] * w_ref[o, 0]
        for c in range(1, cin):
            acc = acc + xs[c] * w_ref[o, c]
        # 2) Height upsample on the MXU: (Ho, H) @ (H, W), bf16 operands, f32 accumulation.
        z_rows.append(jnp.dot(uh, acc.astype(mxu_dtype), preferred_element_type=jnp.float32))
    z = jnp.concatenate(z_rows, axis=0)                 # (Cout*Ho, W) f32

    # 3) Width upsample on the MXU, one lane-dense matmul: (Cout*Ho, W) @ (W, Wo_pad).
    out = jnp.dot(z.astype(mxu_dtype), uwt, preferred_element_type=jnp.float32)
    o_ref[0] = out.astype(o_ref.dtype)


def upsample_forward(x_nchw, weight, *, mxu_dtype=jnp.bfloat16):
    """UpSample forward: bilinear 2x (align_corners=False) then 1x1 conv (no bias).

    x_nchw : (N, Cin, H, W)    with Cin = in_channels + s_factor
    weight : (Cout, Cin, 1, 1) PyTorch OIHW layout, Cout = in_channels
    returns: (N, Cout, 2H, 2W) in x's dtype
    """
    N, Cin, H, W = x_nchw.shape
    Cout = weight.shape[0]
    Ho, Wo = 2 * H, 2 * W
    out_dtype = x_nchw.dtype

    # Lane-density guard: pad the output lane dim up to a multiple of 128 so every output
    # store is an unmasked full-lane vst (sliced off below; no-op when Wo % 128 == 0).
    Wo_pad = ((Wo + 127) // 128) * 128

    # Interpolation constants (cached numpy). Entries 0.25/0.75/1.0 are exact in bf16.
    uh = jnp.asarray(_bilinear_2x_matrix(H), dtype=mxu_dtype)               # (Ho, H)
    uwt_np = np.zeros((W, Wo_pad), np.float64)
    uwt_np[:, :Wo] = _bilinear_2x_matrix(W).T
    uwt = jnp.asarray(uwt_np, dtype=mxu_dtype)                              # (W, Wo_pad)

    w2 = weight.reshape(Cout, Cin).astype(jnp.float32)                      # SMEM scalars

    # VMEM budget (double-buffered x/out blocks + resident constants) and a cost hint for XLA.
    x_bytes = Cin * H * W * jnp.dtype(x_nchw.dtype).itemsize
    out_bytes = Cout * Ho * Wo_pad * jnp.dtype(out_dtype).itemsize
    const_bytes = (Ho * H + W * Wo_pad) * jnp.dtype(mxu_dtype).itemsize
    vmem_limit = int(min(96 * 1024 * 1024,
                         max(16 * 1024 * 1024, 4 * (x_bytes + out_bytes + const_bytes))))
    flops = 2 * N * (Cout * Cin * H * W          # 1x1 conv (low resolution)
                     + Cout * Ho * H * W         # height upsample
                     + Cout * Ho * W * Wo_pad)   # width upsample
    bytes_accessed = int(N * (x_bytes + Cout * Ho * Wo * jnp.dtype(out_dtype).itemsize)
                         + const_bytes + Cout * Cin * 4)

    out2 = pl.pallas_call(
        _upsample_conv_kernel,
        out_shape=jax.ShapeDtypeStruct((N, Cout * Ho, Wo_pad), out_dtype),
        grid=(N,),
        in_specs=[
            pl.BlockSpec(memory_space=pltpu.MemorySpace.SMEM),            # w2 (scalar weights)
            pl.BlockSpec((1, Cin, H, W), lambda n: (n, 0, 0, 0)),         # x  (one image/step)
            pl.BlockSpec((Ho, H), lambda n: (0, 0)),                      # Uh  (resident)
            pl.BlockSpec((W, Wo_pad), lambda n: (0, 0)),                  # UwT (resident)
        ],
        out_specs=pl.BlockSpec((1, Cout * Ho, Wo_pad), lambda n: (n, 0, 0)),
        compiler_params=pltpu.CompilerParams(
            dimension_semantics=("parallel",),
            vmem_limit_bytes=vmem_limit,
        ),
        cost_estimate=pl.CostEstimate(
            flops=flops, transcendentals=0, bytes_accessed=bytes_accessed),
    )(w2, x_nchw, uh, uwt)

    out2 = out2[:, :, :Wo]                       # drop lane padding (no-op when Wo % 128 == 0)
    return out2.reshape(N, Cout, Ho, Wo)         # free reshape back to NCHW


if __name__ == "__main__":
    key = jax.random.PRNGKey(0)
    k_x, k_w = jax.random.split(key)

    # UpSample(in_channels=4, s_factor=4): Cin = 8, Cout = 4.
    in_channels, s_factor = 4, 4
    Cin, Cout = in_channels + s_factor, in_channels
    N, H, W = 2, 16, 64                          # 2W = 128 -> already lane-aligned output

    x = jax.random.normal(k_x, (N, Cin, H, W), jnp.float32)
    weight = jax.random.normal(k_w, (Cout, Cin, 1, 1), jnp.float32) * 0.1

    out = upsample_forward(x, weight)
    out = jax.block_until_ready(out)

    # Reference: bilinear 2x with half-pixel centers (== align_corners=False) + 1x1 conv (f32).
    up_ref = jax.image.resize(x, (N, Cin, 2 * H, 2 * W), method="bilinear")
    ref = jax.lax.conv_general_dilated(
        up_ref, weight, window_strides=(1, 1), padding="VALID",
        dimension_numbers=("NCHW", "OIHW", "NCHW"))

    assert out.shape == (N, Cout, 2 * H, 2 * W), out.shape
    # bf16 MXU operands (f32 accumulation) -> loosen tolerance vs the pure-f32 reference.
    max_err = float(jnp.max(jnp.abs(out - ref)))
    assert jnp.allclose(out, ref, atol=3e-2, rtol=3e-2), max_err
    print("KERNEL_OK")
</pallas_src>

<mosaic_0001>
module attributes {stable_mosaic.version = 11 : i64} {
  func.func @_upsample_conv_kernel(%arg0: i32, %arg1: memref<4x8xf32, #tpu.memory_space<smem>>, %arg2: memref<1x8x16x64xf32, #tpu.memory_space<vmem>>, %arg3: memref<32x16xbf16, #tpu.memory_space<vmem>>, %arg4: memref<64x128xbf16, #tpu.memory_space<vmem>>, %arg5: memref<1x128x128xf32, #tpu.memory_space<vmem>>) attributes {dimension_semantics = [#tpu.dimension_semantics<parallel>], iteration_bounds = array<i64: 2>, scalar_prefetch = 0 : i64, scratch_operands = 0 : i64, tpu.core_type = #tpu.core_type<tc>, window_params = [{transform_indices = @transform_0, window_bounds = array<i64: 4, 8>}, {transform_indices = @transform_1, window_bounds = array<i64: 1, 8, 16, 64>}, {pipeline_mode = #tpu.pipeline_mode<synchronous>, transform_indices = @transform_2, window_bounds = array<i64: 32, 16>}, {pipeline_mode = #tpu.pipeline_mode<synchronous>, transform_indices = @transform_3, window_bounds = array<i64: 64, 128>}, {transform_indices = @transform_4, window_bounds = array<i64: 1, 128, 128>}]} {
    %c0 = arith.constant 0 : index
    %c0_0 = arith.constant 0 : index
    %0 = vector.load %arg3[%c0, %c0_0] : memref<32x16xbf16, #tpu.memory_space<vmem>>, vector<32x16xbf16>
    %c0_1 = arith.constant 0 : index
    %c0_2 = arith.constant 0 : index
    %1 = vector.load %arg4[%c0_1, %c0_2] : memref<64x128xbf16, #tpu.memory_space<vmem>>, vector<64x128xbf16>
    %c0_3 = arith.constant 0 : index
    %c0_4 = arith.constant 0 : index
    %c0_5 = arith.constant 0 : index
    %c0_6 = arith.constant 0 : index
    %2 = vector.load %arg2[%c0_3, %c0_4, %c0_5, %c0_6] : memref<1x8x16x64xf32, #tpu.memory_space<vmem>>, vector<1x1x16x64xf32>
    %3 = vector.shape_cast %2 : vector<1x1x16x64xf32> to vector<16x64xf32>
    %c0_7 = arith.constant 0 : index
    %c1 = arith.constant 1 : index
    %c0_8 = arith.constant 0 : index
    %c0_9 = arith.constant 0 : index
    %4 = vector.load %arg2[%c0_7, %c1, %c0_8, %c0_9] : memref<1x8x16x64xf32, #tpu.memory_space<vmem>>, vector<1x1x16x64xf32>
    %5 = vector.shape_cast %4 : vector<1x1x16x64xf32> to vector<16x64xf32>
    %c0_10 = arith.constant 0 : index
    %c2 = arith.constant 2 : index
    %c0_11 = arith.constant 0 : index
    %c0_12 = arith.constant 0 : index
    %6 = vector.load %arg2[%c0_10, %c2, %c0_11, %c0_12] : memref<1x8x16x64xf32, #tpu.memory_space<vmem>>, vector<1x1x16x64xf32>
    %7 = vector.shape_cast %6 : vector<1x1x16x64xf32> to vector<16x64xf32>
    %c0_13 = arith.constant 0 : index
    %c3 = arith.constant 3 : index
    %c0_14 = arith.constant 0 : index
    %c0_15 = arith.constant 0 : index
    %8 = vector.load %arg2[%c0_13, %c3, %c0_14, %c0_15] : memref<1x8x16x64xf32, #tpu.memory_space<vmem>>, vector<1x1x16x64xf32>
    %9 = vector.shape_cast %8 : vector<1x1x16x64xf32> to vector<16x64xf32>
    %c0_16 = arith.constant 0 : index
    %c4 = arith.constant 4 : index
    %c0_17 = arith.constant 0 : index
    %c0_18 = arith.constant 0 : index
    %10 = vector.load %arg2[%c0_16, %c4, %c0_17, %c0_18] : memref<1x8x16x64xf32, #tpu.memory_space<vmem>>, vector<1x1x16x64xf32>
    %11 = vector.shape_cast %10 : vector<1x1x16x64xf32> to vector<16x64xf32>
    %c0_19 = arith.constant 0 : index
    %c5 = arith.constant 5 : index
    %c0_20 = arith.constant 0 : index
    %c0_21 = arith.constant 0 : index
    %12 = vector.load %arg2[%c0_19, %c5, %c0_20, %c0_21] : memref<1x8x16x64xf32, #tpu.memory_space<vmem>>, vector<1x1x16x64xf32>
    %13 = vector.shape_cast %12 : vector<1x1x16x64xf32> to vector<16x64xf32>
    %c0_22 = arith.constant 0 : index
    %c6 = arith.constant 6 : index
    %c0_23 = arith.constant 0 : index
    %c0_24 = arith.constant 0 : index
    %14 = vector.load %arg2[%c0_22, %c6, %c0_23, %c0_24] : memref<1x8x16x64xf32, #tpu.memory_space<vmem>>, vector<1x1x16x64xf32>
    %15 = vector.shape_cast %14 : vector<1x1x16x64xf32> to vector<16x64xf32>
    %c0_25 = arith.constant 0 : index
    %c7 = arith.constant 7 : index
    %c0_26 = arith.constant 0 : index
    %c0_27 = arith.constant 0 : index
    %16 = vector.load %arg2[%c0_25, %c7, %c0_26, %c0_27] : memref<1x8x16x64xf32, #tpu.memory_space<vmem>>, vector<1x1x16x64xf32>
    %17 = vector.shape_cast %16 : vector<1x1x16x64xf32> to vector<16x64xf32>
    %c0_28 = arith.constant 0 : index
    %c0_29 = arith.constant 0 : index
    %18 = memref.load %arg1[%c0_28, %c0_29] : memref<4x8xf32, #tpu.memory_space<smem>>
    %19 = vector.broadcast %18 : f32 to vector<16x64xf32>
    %20 = arith.mulf %3, %19 : vector<16x64xf32>
    %c0_30 = arith.constant 0 : index
    %c1_31 = arith.constant 1 : index
    %21 = memref.load %arg1[%c0_30, %c1_31] : memref<4x8xf32, #tpu.memory_space<smem>>
    %22 = vector.broadcast %21 : f32 to vector<16x64xf32>
    %23 = arith.mulf %5, %22 : vector<16x64xf32>
    %24 = arith.addf %20, %23 : vector<16x64xf32>
    %c0_32 = arith.constant 0 : index
    %c2_33 = arith.constant 2 : index
    %25 = memref.load %arg1[%c0_32, %c2_33] : memref<4x8xf32, #tpu.memory_space<smem>>
    %26 = vector.broadcast %25 : f32 to vector<16x64xf32>
    %27 = arith.mulf %7, %26 : vector<16x64xf32>
    %28 = arith.addf %24, %27 : vector<16x64xf32>
    %c0_34 = arith.constant 0 : index
    %c3_35 = arith.constant 3 : index
    %29 = memref.load %arg1[%c0_34, %c3_35] : memref<4x8xf32, #tpu.memory_space<smem>>
    %30 = vector.broadcast %29 : f32 to vector<16x64xf32>
    %31 = arith.mulf %9, %30 : vector<16x64xf32>
    %32 = arith.addf %28, %31 : vector<16x64xf32>
    %c0_36 = arith.constant 0 : index
    %c4_37 = arith.constant 4 : index
    %33 = memref.load %arg1[%c0_36, %c4_37] : memref<4x8xf32, #tpu.memory_space<smem>>
    %34 = vector.broadcast %33 : f32 to vector<16x64xf32>
    %35 = arith.mulf %11, %34 : vector<16x64xf32>
    %36 = arith.addf %32, %35 : vector<16x64xf32>
    %c0_38 = arith.constant 0 : index
    %c5_39 = arith.constant 5 : index
    %37 = memref.load %arg1[%c0_38, %c5_39] : memref<4x8xf32, #tpu.memory_space<smem>>
    %38 = vector.broadcast %37 : f32 to vector<16x64xf32>
    %39 = arith.mulf %13, %38 : vector<16x64xf32>
    %40 = arith.addf %36, %39 : vector<16x64xf32>
    %c0_40 = arith.constant 0 : index
    %c6_41 = arith.constant 6 : index
    %41 = memref.load %arg1[%c0_40, %c6_41] : memref<4x8xf32, #tpu.memory_space<smem>>
    %42 = vector.broadcast %41 : f32 to vector<16x64xf32>
    %43 = arith.mulf %15, %42 : vector<16x64xf32>
    %44 = arith.addf %40, %43 : vector<16x64xf32>
    %c0_42 = arith.constant 0 : index
    %c7_43 = arith.constant 7 : index
    %45 = memref.load %arg1[%c0_42, %c7_43] : memref<4x8xf32, #tpu.memory_space<smem>>
    %46 = vector.broadcast %45 : f32 to vector<16x64xf32>
    %47 = arith.mulf %17, %46 : vector<16x64xf32>
    %48 = arith.addf %44, %47 : vector<16x64xf32>
    %49 = arith.truncf %48 : vector<16x64xf32> to vector<16x64xbf16>
    %cst = arith.constant dense<0.000000e+00> : vector<32x64xf32>
    %50 = tpu.matmul %0, %49, %cst {dimension_numbers = #tpu.dot_dimension_numbers<[1], [0], [0], [1], [0, 0, 1, 1], [], []>} : vector<32x16xbf16>, vector<16x64xbf16>, vector<32x64xf32> -> vector<32x64xf32>
    %c1_44 = arith.constant 1 : index
    %c0_45 = arith.constant 0 : index
    %51 = memref.load %arg1[%c1_44, %c0_45] : memref<4x8xf32, #tpu.memory_space<smem>>
    %52 = vector.broadcast %51 : f32 to vector<16x64xf32>
    %53 = arith.mulf %3, %52 : vector<16x64xf32>
    %c1_46 = arith.constant 1 : index
    %c1_47 = arith.constant 1 : index
    %54 = memref.load %arg1[%c1_46, %c1_47] : memref<4x8xf32, #tpu.memory_space<smem>>
    %55 = vector.broadcast %54 : f32 to vector<16x64xf32>
    %56 = arith.mulf %5, %55 : vector<16x64xf32>
    %57 = arith.addf %53, %56 : vector<16x64xf32>
    %c1_48 = arith.constant 1 : index
    %c2_49 = arith.constant 2 : index
    %58 = memref.load %arg1[%c1_48, %c2_49] : memref<4x8xf32, #tpu.memory_space<smem>>
    %59 = vector.broadcast %58 : f32 to vector<16x64xf32>
    %60 = arith.mulf %7, %59 : vector<16x64xf32>
    %61 = arith.addf %57, %60 : vector<16x64xf32>
    %c1_50 = arith.constant 1 : index
    %c3_51 = arith.constant 3 : index
    %62 = memref.load %arg1[%c1_50, %c3_51] : memref<4x8xf32, #tpu.memory_space<smem>>
    %63 = vector.broadcast %62 : f32 to vector<16x64xf32>
    %64 = arith.mulf %9, %63 : vector<16x64xf32>
    %65 = arith.addf %61, %64 : vector<16x64xf32>
    %c1_52 = arith.constant 1 : index
    %c4_53 = arith.constant 4 : index
    %66 = memref.load %arg1[%c1_52, %c4_53] : memref<4x8xf32, #tpu.memory_space<smem>>
    %67 = vector.broadcast %66 : f32 to vector<16x64xf32>
    %68 = arith.mulf %11, %67 : vector<16x64xf32>
    %69 = arith.addf %65, %68 : vector<16x64xf32>
    %c1_54 = arith.constant 1 : index
    %c5_55 = arith.constant 5 : index
    %70 = memref.load %arg1[%c1_54, %c5_55] : memref<4x8xf32, #tpu.memory_space<smem>>
    %71 = vector.broadcast %70 : f32 to vector<16x64xf32>
    %72 = arith.mulf %13, %71 : vector<16x64xf32>
    %73 = arith.addf %69, %72 : vector<16x64xf32>
    %c1_56 = arith.constant 1 : index
    %c6_57 = arith.constant 6 : index
    %74 = memref.load %arg1[%c1_56, %c6_57] : memref<4x8xf32, #tpu.memory_space<smem>>
    %75 = vector.broadcast %74 : f32 to vector<16x64xf32>
    %76 = arith.mulf %15, %75 : vector<16x64xf32>
    %77 = arith.addf %73, %76 : vector<16x64xf32>
    %c1_58 = arith.constant 1 : index
    %c7_59 = arith.constant 7 : index
    %78 = memref.load %arg1[%c1_58, %c7_59] : memref<4x8xf32, #tpu.memory_space<smem>>
    %79 = vector.broadcast %78 : f32 to vector<16x64xf32>
    %80 = arith.mulf %17, %79 : vector<16x64xf32>
    %81 = arith.addf %77, %80 : vector<16x64xf32>
    %82 = arith.truncf %81 : vector<16x64xf32> to vector<16x64xbf16>
    %cst_60 = arith.constant dense<0.000000e+00> : vector<32x64xf32>
    %83 = tpu.matmul %0, %82, %cst_60 {dimension_numbers = #tpu.dot_dimension_numbers<[1], [0], [0], [1], [0, 0, 1, 1], [], []>} : vector<32x16xbf16>, vector<16x64xbf16>, vector<32x64xf32> -> vector<32x64xf32>
    %c2_61 = arith.constant 2 : index
    %c0_62 = arith.constant 0 : index
    %84 = memref.load %arg1[%c2_61, %c0_62] : memref<4x8xf32, #tpu.memory_space<smem>>
    %85 = vector.broadcast %84 : f32 to vector<16x64xf32>
    %86 = arith.mulf %3, %85 : vector<16x64xf32>
    %c2_63 = arith.constant 2 : index
    %c1_64 = arith.constant 1 : index
    %87 = memref.load %arg1[%c2_63, %c1_64] : memref<4x8xf32, #tpu.memory_space<smem>>
    %88 = vector.broadcast %87 : f32 to vector<16x64xf32>
    %89 = arith.mulf %5, %88 : vector<16x64xf32>
    %90 = arith.addf %86, %89 : vector<16x64xf32>
    %c2_65 = arith.constant 2 : index
    %c2_66 = arith.constant 2 : index
    %91 = memref.load %arg1[%c2_65, %c2_66] : memref<4x8xf32, #tpu.memory_space<smem>>
    %92 = vector.broadcast %91 : f32 to vector<16x64xf32>
    %93 = arith.mulf %7, %92 : vector<16x64xf32>
    %94 = arith.addf %90, %93 : vector<16x64xf32>
    %c2_67 = arith.constant 2 : index
    %c3_68 = arith.constant 3 : index
    %95 = memref.load %arg1[%c2_67, %c3_68] : memref<4x8xf32, #tpu.memory_space<smem>>
    %96 = vector.broadcast %95 : f32 to vector<16x64xf32>
    %97 = arith.mulf %9, %96 : vector<16x64xf32>
    %98 = arith.addf %94, %97 : vector<16x64xf32>
    %c2_69 = arith.constant 2 : index
    %c4_70 = arith.constant 4 : index
    %99 = memref.load %arg1[%c2_69, %c4_70] : memref<4x8xf32, #tpu.memory_space<smem>>
    %100 = vector.broadcast %99 : f32 to vector<16x64xf32>
    %101 = arith.mulf %11, %100 : vector<16x64xf32>
    %102 = arith.addf %98, %101 : vector<16x64xf32>
    %c2_71 = arith.constant 2 : index
    %c5_72 = arith.constant 5 : index
    %103 = memref.load %arg1[%c2_71, %c5_72] : memref<4x8xf32, #tpu.memory_space<smem>>
    %104 = vector.broadcast %103 : f32 to vector<16x64xf32>
    %105 = arith.mulf %13, %104 : vector<16x64xf32>
    %106 = arith.addf %102, %105 : vector<16x64xf32>
    %c2_73 = arith.constant 2 : index
    %c6_74 = arith.constant 6 : index
    %107 = memref.load %arg1[%c2_73, %c6_74] : memref<4x8xf32, #tpu.memory_space<smem>>
    %108 = vector.broadcast %107 : f32 to vector<16x64xf32>
    %109 = arith.mulf %15, %108 : vector<16x64xf32>
    %110 = arith.addf %106, %109 : vector<16x64xf32>
    %c2_75 = arith.constant 2 : index
    %c7_76 = arith.constant 7 : index
    %111 = memref.load %arg1[%c2_75, %c7_76] : memref<4x8xf32, #tpu.memory_space<smem>>
    %112 = vector.broadcast %111 : f32 to vector<16x64xf32>
    %113 = arith.mulf %17, %112 : vector<16x64xf32>
    %114 = arith.addf %110, %113 : vector<16x64xf32>
    %115 = arith.truncf %114 : vector<16x64xf32> to vector<16x64xbf16>
    %cst_77 = arith.constant dense<0.000000e+00> : vector<32x64xf32>
    %116 = tpu.matmul %0, %115, %cst_77 {dimension_numbers = #tpu.dot_dimension_numbers<[1], [0], [0], [1], [0, 0, 1, 1], [], []>} : vector<32x16xbf16>, vector<16x64xbf16>, vector<32x64xf32> -> vector<32x64xf32>
    %c3_78 = arith.constant 3 : index
    %c0_79 = arith.constant 0 : index
    %117 = memref.load %arg1[%c3_78, %c0_79] : memref<4x8xf32, #tpu.memory_space<smem>>
    %118 = vector.broadcast %117 : f32 to vector<16x64xf32>
    %119 = arith.mulf %3, %118 : vector<16x64xf32>
    %c3_80 = arith.constant 3 : index
    %c1_81 = arith.constant 1 : index
    %120 = memref.load %arg1[%c3_80, %c1_81] : memref<4x8xf32, #tpu.memory_space<smem>>
    %121 = vector.broadcast %120 : f32 to vector<16x64xf32>
    %122 = arith.mulf %5, %121 : vector<16x64xf32>
    %123 = arith.addf %119, %122 : vector<16x64xf32>
    %c3_82 = arith.constant 3 : index
    %c2_83 = arith.constant 2 : index
    %124 = memref.load %arg1[%c3_82, %c2_83] : memref<4x8xf32, #tpu.memory_space<smem>>
    %125 = vector.broadcast %124 : f32 to vector<16x64xf32>
    %126 = arith.mulf %7, %125 : vector<16x64xf32>
    %127 = arith.addf %123, %126 : vector<16x64xf32>
    %c3_84 = arith.constant 3 : index
    %c3_85 = arith.constant 3 : index
    %128 = memref.load %arg1[%c3_84, %c3_85] : memref<4x8xf32, #tpu.memory_space<smem>>
    %129 = vector.broadcast %128 : f32 to vector<16x64xf32>
    %130 = arith.mulf %9, %129 : vector<16x64xf32>
    %131 = arith.addf %127, %130 : vector<16x64xf32>
    %c3_86 = arith.constant 3 : index
    %c4_87 = arith.constant 4 : index
    %132 = memref.load %arg1[%c3_86, %c4_87] : memref<4x8xf32, #tpu.memory_space<smem>>
    %133 = vector.broadcast %132 : f32 to vector<16x64xf32>
    %134 = arith.mulf %11, %133 : vector<16x64xf32>
    %135 = arith.addf %131, %134 : vector<16x64xf32>
    %c3_88 = arith.constant 3 : index
    %c5_89 = arith.constant 5 : index
    %136 = memref.load %arg1[%c3_88, %c5_89] : memref<4x8xf32, #tpu.memory_space<smem>>
    %137 = vector.broadcast %136 : f32 to vector<16x64xf32>
    %138 = arith.mulf %13, %137 : vector<16x64xf32>
    %139 = arith.addf %135, %138 : vector<16x64xf32>
    %c3_90 = arith.constant 3 : index
    %c6_91 = arith.constant 6 : index
    %140 = memref.load %arg1[%c3_90, %c6_91] : memref<4x8xf32, #tpu.memory_space<smem>>
    %141 = vector.broadcast %140 : f32 to vector<16x64xf32>
    %142 = arith.mulf %15, %141 : vector<16x64xf32>
    %143 = arith.addf %139, %142 : vector<16x64xf32>
    %c3_92 = arith.constant 3 : index
    %c7_93 = arith.constant 7 : index
    %144 = memref.load %arg1[%c3_92, %c7_93] : memref<4x8xf32, #tpu.memory_space<smem>>
    %145 = vector.broadcast %144 : f32 to vector<16x64xf32>
    %146 = arith.mulf %17, %145 : vector<16x64xf32>
    %147 = arith.addf %143, %146 : vector<16x64xf32>
    %148 = arith.truncf %147 : vector<16x64xf32> to vector<16x64xbf16>
    %cst_94 = arith.constant dense<0.000000e+00> : vector<32x64xf32>
    %149 = tpu.matmul %0, %148, %cst_94 {dimension_numbers = #tpu.dot_dimension_numbers<[1], [0], [0], [1], [0, 0, 1, 1], [], []>} : vector<32x16xbf16>, vector<16x64xbf16>, vector<32x64xf32> -> vector<32x64xf32>
    %150 = tpu.concatenate %50, %83, %116, %149 in 0 : vector<32x64xf32>, vector<32x64xf32>, vector<32x64xf32>, vector<32x64xf32> -> vector<128x64xf32>
    %151 = arith.truncf %150 : vector<128x64xf32> to vector<128x64xbf16>
    %cst_95 = arith.constant dense<0.000000e+00> : vector<128x128xf32>
    %152 = tpu.matmul %151, %1, %cst_95 {dimension_numbers = #tpu.dot_dimension_numbers<[1], [0], [0], [1], [0, 0, 1, 1], [], []>} : vector<128x64xbf16>, vector<64x128xbf16>, vector<128x128xf32> -> vector<128x128xf32>
    %c0_96 = arith.constant 0 : index
    %c0_97 = arith.constant 0 : index
    %c0_98 = arith.constant 0 : index
    %153 = vector.load %arg5[%c0_96, %c0_97, %c0_98] : memref<1x128x128xf32, #tpu.memory_space<vmem>>, vector<1x128x128xf32>
    %154 = vector.shape_cast %153 : vector<1x128x128xf32> to vector<128x128xf32>
    %155 = vector.shape_cast %152 : vector<128x128xf32> to vector<1x128x128xf32>
    tpu.vector_store %arg5[%c0_96, %c0_97, %c0_98], %155 {strides = array<i32>} : memref<1x128x128xf32, #tpu.memory_space<vmem>>, vector<1x128x128xf32>,
    return
  }
  func.func @transform_0(%arg0: i32) -> (i32, i32) {
    %c0_i32 = arith.constant 0 : i32
    %c0_i32_0 = arith.constant 0 : i32
    %c0_i32_1 = arith.constant 0 : i32
    return %c0_i32, %c0_i32_0 : i32, i32
  }
  func.func @transform_1(%arg0: i32) -> (i32, i32, i32, i32) {
    %c0_i32 = arith.constant 0 : i32
    %c0_i32_0 = arith.constant 0 : i32
    %c0_i32_1 = arith.constant 0 : i32
    %c0_i32_2 = arith.constant 0 : i32
    return %arg0, %c0_i32, %c0_i32_0, %c0_i32_1 : i32, i32, i32, i32
  }
  func.func @transform_2(%arg0: i32) -> (i32, i32) {
    %c0_i32 = arith.constant 0 : i32
    %c0_i32_0 = arith.constant 0 : i32
    %c0_i32_1 = arith.constant 0 : i32
    return %c0_i32, %c0_i32_0 : i32, i32
  }
  func.func @transform_3(%arg0: i32) -> (i32, i32) {
    %c0_i32 = arith.constant 0 : i32
    %c0_i32_0 = arith.constant 0 : i32
    %c0_i32_1 = arith.constant 0 : i32
    return %c0_i32, %c0_i32_0 : i32, i32
  }
  func.func @transform_4(%arg0: i32) -> (i32, i32, i32) {
    %c0_i32 = arith.constant 0 : i32
    %c0_i32_0 = arith.constant 0 : i32
    %c0_i32_1 = arith.constant 0 : i32
    return %arg0, %c0_i32, %c0_i32_0 : i32, i32, i32
  }
}

</mosaic_0001>

<llo_original>
// kernel: tpu_custom_call.1
$region0: #{tpu_custom_call.1}
  #allocation0 [shape = 'u32[]', space=smem, size = 0x4, offset = 0x4, fixed_abs, tag = 'smem constant byte address 0x4 - core index']
  #allocation1 [shape = 'u32[144,128]{1,0:T(1,128)}', space=vmem, size = 0x12000, scoped, tag = 'internal scratch']
  %s0 = inlined_call_operand.hbm [shape: f32[4,8], index: 0, kind: input, shape index: {}]
  %s1 = inlined_call_operand.hbm [shape: f32[2,8,16,64], index: 1, kind: input, shape index: {}]
  %s2 = inlined_call_operand.vmem [shape: bf16[32,16], index: 2, kind: input, shape index: {}]
  %s3 = inlined_call_operand.vmem [shape: bf16[64,128], index: 3, kind: input, shape index: {}]
  %s4 = inlined_call_operand.hbm [shape: f32[2,128,128], index: 4, kind: output, shape index: {}]
  %s5 = sld [smem:[#allocation0]]
  $region57: #{tpu_custom_call.1} parent=0
    _
  %s7 = ssub.s32 1, %s5
  %s8 = scalar_select 0, %s7, %s5
  $region1: #{tpu_custom_call.1} parent=0
    #allocation2 [shape = 'u8[2048]{0}', space=smem, size = 0x800, scoped, tag = 'input window, operand 0, single buffered']
    #allocation3 [shape = 's32[2]{0}', space=sflag, size = 0x8, scoped, tag = 'scoped memory for tpu_custom_call.1']
    #allocation4 [shape = 's32[2]{0}', space=sflag, size = 0x8, scoped, tag = 'scoped memory for tpu_custom_call.1']
    #allocation5 [shape = 's32[2]{0}', space=sflag, size = 0x8, scoped, tag = 'scoped memory for tpu_custom_call.1']
    #allocation6 [shape = 'u8[131072]{0}', space=vmem, size = 0x20000, scoped, tag = 'input window, operand 1']
    #allocation7 [shape = 'u8[131072]{0}', space=vmem, size = 0x20000, scoped, tag = 'output window, operand 0']
    %9 = vsyncpa [#allocation5], 0
    %10 = vsyncpa [#allocation3], 0
    %s11 = scalar_lea.sflag [#allocation3], 1
    %12 = vsyncpa %s11, 0
    %13 = vsyncpa [#allocation4], 0
    %s14 = scalar_lea.sflag [#allocation4], 1
    %15 = vsyncpa %s14, 0
    loop: start=0, step=1, limit=4
    $region2: #{tpu_custom_call.1} parent=1 // loop_pre_header
      _
    $region3: #{tpu_custom_call.1} parent=1 // loop_header
      %s17 = sphi 0, %s21
      %p18 = scmp.ge.s32.totalorder %s17, 4
      %s25 = sphi 0, %s25
      %s27 = sphi 0, %s25
      %s28 = sphi 0, %s27
      %s42 = sphi 0, %s28
      %s48 = sphi 0, %s50
      %s51 = sphi 0, %s48
      %s52 = sphi 0, %s51
      %s68 = sphi 0, %s52
      %s72 = sphi 0, %s72
      %s74 = sphi 0, %s72
      %s75 = sphi 0, %s74
      %s89 = sphi 0, %s75
      %s93 = sphi 0, %s93
      %s95 = sphi 0, %s93
      %s96 = sphi 0, %s95
      %s110 = sphi 0, %s96
      %s116 = sphi 0, %s118
      %s119 = sphi 0, %s116
      %s120 = sphi 0, %s119
      %s136 = sphi 0, %s120
    $region4: #{tpu_custom_call.1} parent=1 // loop_header_branch
      %20 = sbr.rel (%p18) target = $region8
    $region5: #{tpu_custom_call.1} parent=1 // loop_body
      %s22 = ssub.s32 %s17, 1
      %s23 = ssub.s32 %s17, 2
      %s24 = sadd.s32 %s17, 1
      %s26 = sadd.s32 %s25, 1
      %p29 = scmp.eq.s32.totalorder %s17, 1
      %p30 = scmp.ne.s32.totalorder %s25, %s27
      %p31 = scmp.eq.s32.totalorder %s17, 0
      %p32 = por %p30, %p31
      %p33 = scmp.ne.s32.totalorder %s25, %s27
      %p34 = scmp.eq.s32.totalorder %s22, 1
      %p35 = por %p33, %p34
      %p36 = scmp.ne.s32.totalorder %s27, %s28
      %p37 = scmp.eq.s32.totalorder %s22, 0
      %p38 = por %p36, %p37
      %p39 = scmp.ne.s32.totalorder %s27, %s28
      %p40 = scmp.eq.s32.totalorder %s23, 1
      %p41 = por %p39, %p40
      %p43 = scmp.ne.s32.totalorder %s28, %s42
      %p44 = scmp.eq.s32.totalorder %s23, 0
      %p45 = por %p43, %p44
      %s46 = ssub.s32 %s17, %s24
      %p47 = scmp.eq.s32.totalorder %s46, 0
      %s49 = sadd.s32 %s48, 1
      %s50 = scalar_select %p47, %s48, %s49
      %p53 = pneg %p47
      %p54 = scmp.eq.s32.totalorder %s17, 1
      %p55 = por %p53, %p54
      %p56 = scmp.ne.s32.totalorder %s48, %s51
      %p57 = scmp.eq.s32.totalorder %s17, 0
      %p58 = por %p56, %p57
      %p59 = scmp.ne.s32.totalorder %s48, %s51
      %p60 = scmp.eq.s32.totalorder %s22, 1
      %p61 = por %p59, %p60
      %p62 = scmp.ne.s32.totalorder %s51, %s52
      %p63 = scmp.eq.s32.totalorder %s22, 0
      %p64 = por %p62, %p63
      %p65 = scmp.ne.s32.totalorder %s51, %s52
      %p66 = scmp.eq.s32.totalorder %s23, 1
      %p67 = por %p65, %p66
      %p69 = scmp.ne.s32.totalorder %s52, %s68
      %p70 = scmp.eq.s32.totalorder %s23, 0
      %p71 = por %p69, %p70
      %s73 = sadd.s32 %s72, 1
      %p76 = scmp.eq.s32.totalorder %s17, 1
      %p77 = scmp.ne.s32.totalorder %s72, %s74
      %p78 = scmp.eq.s32.totalorder %s17, 0
      %p79 = por %p77, %p78
      %p80 = scmp.ne.s32.totalorder %s72, %s74
      %p81 = scmp.eq.s32.totalorder %s22, 1
      %p82 = por %p80, %p81
      %p83 = scmp.ne.s32.totalorder %s74, %s75
      %p84 = scmp.eq.s32.totalorder %s22, 0
      %p85 = por %p83, %p84
      %p86 = scmp.ne.s32.totalorder %s74, %s75
      %p87 = scmp.eq.s32.totalorder %s23, 1
      %p88 = por %p86, %p87
      %p90 = scmp.ne.s32.totalorder %s75, %s89
      %p91 = scmp.eq.s32.totalorder %s23, 0
      %p92 = por %p90, %p91
      %s94 = sadd.s32 %s93, 1
      %p97 = scmp.eq.s32.totalorder %s17, 1
      %p98 = scmp.ne.s32.totalorder %s93, %s95
      %p99 = scmp.eq.s32.totalorder %s17, 0
      %p100 = por %p98, %p99
      %p101 = scmp.ne.s32.totalorder %s93, %s95
      %p102 = scmp.eq.s32.totalorder %s22, 1
      %p103 = por %p101, %p102
      %p104 = scmp.ne.s32.totalorder %s95, %s96
      %p105 = scmp.eq.s32.totalorder %s22, 0
      %p106 = por %p104, %p105
      %p107 = scmp.ne.s32.totalorder %s95, %s96
      %p108 = scmp.eq.s32.totalorder %s23, 1
      %p109 = por %p107, %p108
      %p111 = scmp.ne.s32.totalorder %s96, %s110
      %p112 = scmp.eq.s32.totalorder %s23, 0
      %p113 = por %p111, %p112
      %s114 = ssub.s32 %s17, %s24
      %p115 = scmp.eq.s32.totalorder %s114, 0
      %s117 = sadd.s32 %s116, 1
      %s118 = scalar_select %p115, %s116, %s117
      %p121 = pneg %p115
      %p122 = scmp.eq.s32.totalorder %s17, 1
      %p123 = por %p121, %p122
      %p124 = scmp.ne.s32.totalorder %s116, %s119
      %p125 = scmp.eq.s32.totalorder %s17, 0
      %p126 = por %p124, %p125
      %p127 = scmp.ne.s32.totalorder %s116, %s119
      %p128 = scmp.eq.s32.totalorder %s22, 1
      %p129 = por %p127, %p128
      %p130 = scmp.ne.s32.totalorder %s119, %s120
      %p131 = scmp.eq.s32.totalorder %s22, 0
      %p132 = por %p130, %p131
      %p133 = scmp.ne.s32.totalorder %s119, %s120
      %p134 = scmp.eq.s32.totalorder %s23, 1
      %p135 = por %p133, %p134
      %p137 = scmp.ne.s32.totalorder %s120, %s136
      %p138 = scmp.eq.s32.totalorder %s23, 0
      %p139 = por %p137, %p138
      %p140 = scmp.le.s32.totalorder 1, %s17
      %p141 = scmp.lt.s32.totalorder %s17, 3
      %p142 = pnand %p140, %p141
      %p143 = pneg %p142
      // Predicated region
      $region9: #{tpu_custom_call.1} parent=5 // pred_check
        _
      $region10: #{tpu_custom_call.1} parent=5 // pred_check_branch
        %145 = sbr.rel (%p142) target = $region12
      $region11: #{tpu_custom_call.1} parent=5 // pred_region
        %s146 = ssub.s32 %s17, 1
        // Predicated region
        $region13: #{tpu_custom_call.1} parent=11 // pred_check
          %p147 = pneg %p38
        $region14: #{tpu_custom_call.1} parent=11 // pred_check_branch
          %149 = sbr.rel (%p147) target = $region16
        $region15: #{tpu_custom_call.1} parent=11 // pred_region
          %s151 = ssub.s32 64, 64
          %152 = vsyncadd [#allocation5], %s151
          %155 = dma.hbm_to_smem %s0, 64, [#allocation2], [#allocation5]
        $region16: #{tpu_custom_call.1} parent=11 // pred_fallthru
          _
        // Predicated region
        $region17: #{tpu_custom_call.1} parent=11 // pred_check
          %p156 = pneg %p85
        $region18: #{tpu_custom_call.1} parent=11 // pred_check_branch
          %158 = sbr.rel (%p156) target = $region20
        $region19: #{tpu_custom_call.1} parent=11 // pred_region
          _
        $region20: #{tpu_custom_call.1} parent=11 // pred_fallthru
          _
        // Predicated region
        $region21: #{tpu_custom_call.1} parent=11 // pred_check
          %p159 = pneg %p106
        $region22: #{tpu_custom_call.1} parent=11 // pred_check_branch
          %161 = sbr.rel (%p159) target = $region24
        $region23: #{tpu_custom_call.1} parent=11 // pred_region
          _
        $region24: #{tpu_custom_call.1} parent=11 // pred_fallthru
          _
      $region12: #{tpu_custom_call.1} parent=5 // pred_fallthru
        _
      %p162 = scmp.lt.s32.totalorder %s17, 2
      // Predicated region
      $region25: #{tpu_custom_call.1} parent=5 // pred_check
        %p163 = pneg %p162
      $region26: #{tpu_custom_call.1} parent=5 // pred_check_branch
        %165 = sbr.rel (%p163) target = $region28
      $region27: #{tpu_custom_call.1} parent=5 // pred_region
        // Predicated region
        $region29: #{tpu_custom_call.1} parent=27 // pred_check
          %p166 = pneg %p58
        $region30: #{tpu_custom_call.1} parent=27 // pred_check_branch
          %168 = sbr.rel (%p166) target = $region32
        $region31: #{tpu_custom_call.1} parent=27 // pred_region
          %s169 = sand.u32 %s48, 1
          %s170 = scalar_lea.sflag [#allocation3], %s169
          %s171 = sand.u32 %s48, 1
          %s172 = smul.addr %s171, 128
          %s173 = scalar_lea.vmem [#allocation6], %s172
          %s175 = ssub.s32 2048, 2048
          %176 = vsyncadd %s170, %s175
          %s177 = smul.addr %s17, 16
          %s178 = smul.addr %s177, 128
          %s179 = scalar_lea.hbm %s1, %s178
          %s180 = sshll.u32 %s173, 4
          %s181 = int_to_ptr.vmem [resolvable:$true] %s180
          %186 = dma.hbm_to_vmem [thread:$0]  %s179, 2048, %s181, %s170, 128, 128, 8
        $region32: #{tpu_custom_call.1} parent=27 // pred_fallthru
          _
      $region28: #{tpu_custom_call.1} parent=5 // pred_fallthru
        _
      %p187 = scmp.le.s32.totalorder 1, %s17
      %p188 = scmp.lt.s32.totalorder %s17, 3
      %p189 = pnand %p187, %p188
      %p190 = pneg %p189
      // Predicated region
      $region33: #{tpu_custom_call.1} parent=5 // pred_check
        _
      $region34: #{tpu_custom_call.1} parent=5 // pred_check_branch
        %192 = sbr.rel (%p189) target = $region36
      $region35: #{tpu_custom_call.1} parent=5 // pred_region
        %s193 = ssub.s32 %s17, 1
        // Predicated region
        $region37: #{tpu_custom_call.1} parent=35 // pred_check
          %p194 = pneg %p38
        $region38: #{tpu_custom_call.1} parent=35 // pred_check_branch
          %196 = sbr.rel (%p194) target = $region40
        $region39: #{tpu_custom_call.1} parent=35 // pred_region
          %197 = dma.done [#allocation5], 64
        $region40: #{tpu_custom_call.1} parent=35 // pred_fallthru
          _
        %s198 = sand.u32 %s51, 1
        %s199 = scalar_lea.sflag [#allocation3], %s198
        %s200 = sand.u32 %s51, 1
        %s201 = smul.addr %s200, 128
        %s202 = scalar_lea.vmem [#allocation6], %s201
        // Predicated region
        $region41: #{tpu_custom_call.1} parent=35 // pred_check
          %p203 = pneg %p64
        $region42: #{tpu_custom_call.1} parent=35 // pred_check_branch
          %205 = sbr.rel (%p203) target = $region44
        $region43: #{tpu_custom_call.1} parent=35 // pred_region
          %206 = dma.done %s199, 2048
        $region44: #{tpu_custom_call.1} parent=35 // pred_fallthru
          _
        %207 = sfence
        %p208 = pneg %p38
        %p209 = pneg %p35
        %s210 = sand.u32 %s51, 1
        %s211 = scalar_lea.sflag [#allocation3], %s210
        %s212 = sand.u32 %s51, 1
        %s213 = smul.addr %s212, 128
        %s214 = scalar_lea.vmem [#allocation6], %s213
        %p215 = pneg %p64
        %p216 = pneg %p61
        %p217 = pneg %p85
        %p218 = pneg %p82
        %p219 = pneg %p106
        %p220 = pneg %p103
        %p221 = pneg %p132
        %p222 = pneg %p129
        %s223 = sand.u32 %s119, 1
        %s224 = scalar_lea.sflag [#allocation4], %s223
        %s225 = sand.u32 %s119, 1
        %s226 = smul.addr %s225, 128
        %s227 = scalar_lea.vmem [#allocation7], %s226
        %v229 = vld [vmem:[%s2] sm:$0xf]
        %v230 = vld [vmem:[%s2 + $0x4] sm:$0xf]
        %v231 = vld [vmem:[%s2 + $0x8] sm:$0xf]
        %v232 = vld [vmem:[%s2 + $0xc] sm:$0xf]
        %v233 = vld [vmem:[%s3] sm:$0xf]
        %v234 = vld [vmem:[%s3 + $0x4] sm:$0xf]
        %v235 = vld [vmem:[%s3 + $0x8] sm:$0xf]
        %v236 = vld [vmem:[%s3 + $0xc] sm:$0xf]
        %v237 = vld [vmem:[%s3 + $0x10] sm:$0xf]
        %v238 = vld [vmem:[%s3 + $0x14] sm:$0xf]
        %v239 = vld [vmem:[%s3 + $0x18] sm:$0xf]
        %v240 = vld [vmem:[%s3 + $0x1c] sm:$0xf]
        %v241 = vld [vmem:[%s202] sm:$0xff]
        %v242 = vld [vmem:[%s202 + $0x8] sm:$0xff]
        %s243 = scalar_lea.vmem %s202, 16 [#allocation6]
        %v244 = vld [vmem:[%s243] sm:$0xff]
        %v245 = vld [vmem:[%s243 + $0x8] sm:$0xff]
        %s246 = scalar_lea.vmem %s202, 32 [#allocation6]
        %v247 = vld [vmem:[%s246] sm:$0xff]
        %v248 = vld [vmem:[%s246 + $0x8] sm:$0xff]
        %s249 = scalar_lea.vmem %s202, 48 [#allocation6]
        %v250 = vld [vmem:[%s249] sm:$0xff]
        %v251 = vld [vmem:[%s249 + $0x8] sm:$0xff]
        %s252 = scalar_lea.vmem %s202, 64 [#allocation6]
        %v253 = vld [vmem:[%s252] sm:$0xff]
        %v254 = vld [vmem:[%s252 + $0x8] sm:$0xff]
        %s255 = scalar_lea.vmem %s202, 80 [#allocation6]
        %v256 = vld [vmem:[%s255] sm:$0xff]
        %v257 = vld [vmem:[%s255 + $0x8] sm:$0xff]
        %s258 = scalar_lea.vmem %s202, 96 [#allocation6]
        %v259 = vld [vmem:[%s258] sm:$0xff]
        %v260 = vld [vmem:[%s258 + $0x8] sm:$0xff]
        %s261 = scalar_lea.vmem %s202, 112 [#allocation6]
        %v262 = vld [vmem:[%s261] sm:$0xff]
        %v263 = vld [vmem:[%s261 + $0x8] sm:$0xff]
        %s264 = sld [smem:[#allocation2]]
        %v265 = vstv %s264
        %v266 = vmul.f32 %v241, %v265
        %v267 = vmul.f32 %v242, %v265
        %s268 = sld [smem:[#allocation2 + $0x1]]
        %v269 = vstv %s268
        %v270 = vmul.f32 %v244, %v269
        %v271 = vmul.f32 %v245, %v269
        %v272 = vadd.f32 %v266, %v270
        %v273 = vadd.f32 %v267, %v271
        %s274 = sld [smem:[#allocation2 + $0x2]]
        %v275 = vstv %s274
        %v276 = vmul.f32 %v247, %v275
        %v277 = vmul.f32 %v248, %v275
        %v278 = vadd.f32 %v272, %v276
        %v279 = vadd.f32 %v273, %v277
        %s280 = sld [smem:[#allocation2 + $0x3]]
        %v281 = vstv %s280
        %v282 = vmul.f32 %v250, %v281
        %v283 = vmul.f32 %v251, %v281
        %v284 = vadd.f32 %v278, %v282
        %v285 = vadd.f32 %v279, %v283
        %s286 = sld [smem:[#allocation2 + $0x4]]
        %v287 = vstv %s286
        %v288 = vmul.f32 %v253, %v287
        %v289 = vmul.f32 %v254, %v287
        %v290 = vadd.f32 %v284, %v288
        %v291 = vadd.f32 %v285, %v289
        %s292 = sld [smem:[#allocation2 + $0x5]]
        %v293 = vstv %s292
        %v294 = vmul.f32 %v256, %v293
        %v295 = vmul.f32 %v257, %v293
        %v296 = vadd.f32 %v290, %v294
        %v297 = vadd.f32 %v291, %v295
        %s298 = sld [smem:[#allocation2 + $0x6]]
        %v299 = vstv %s298
        %v300 = vmul.f32 %v259, %v299
        %v301 = vmul.f32 %v260, %v299
        %v302 = vadd.f32 %v296, %v300
        %v303 = vadd.f32 %v297, %v301
        %s304 = sld [smem:[#allocation2 + $0x7]]
        %v305 = vstv %s304
        %v306 = vmul.f32 %v262, %v305
        %v307 = vmul.f32 %v263, %v305
        %v308 = vadd.f32 %v302, %v306
        %v309 = vadd.f32 %v303, %v307
        %v310 = vpack.c.bf16 %v309, %v308
        %v315 = vunpack.c.l.b16 %v229
        %v316 = vunpack.c.l.b16 %v230
        %v317 = vunpack.c.l.b16 %v231
        %v318 = vunpack.c.l.b16 %v232
        %v319 = vpack.c.b16 %v316, %v315
        %v320 = vpack.c.b16 %v318, %v317
        %vm321 = vcmask 130048
        %v323 = vsel %vm321, %v319, 0
        %v326 = vsel %vm321, %v320, 0
        %328 = vmatprep.subr.bf16.mxu0 0
        %329 = vmatpush1.bf16.msra.mxu0 %v310
        %330 = vmatprep.subr.bf16.mxu0 0
        %331 = vmatpush1.bf16.msra.mxu0 0
        %332 = vmatprep.subr.bf16.mxu0 0
        %333 = vmatpush1.bf16.msra.mxu0 0
        %334 = vmatprep.subr.bf16.mxu0 0
        %335 = vmatpush1.bf16.msra.mxu0 0
        %336 = vmatprep.subr.bf16.mxu0 0
        %337 = vmatpush1.bf16.msra.mxu0 0
        %338 = vmatprep.subr.bf16.mxu0 0
        %339 = vmatpush1.bf16.msra.mxu0 0
        %340 = vmatprep.subr.bf16.mxu0 0
        %341 = vmatpush1.bf16.msra.mxu0 0
        %342 = vmatprep.subr.bf16.mxu0 0
        %343 = vmatpush1.bf16.msra.mxu0 0
        %344 = vmatprep.subr.bf16.mxu0 0
        %345 = vmatpush1.bf16.msra.mxu0 0
        %346 = vmatprep.subr.bf16.mxu0 0
        %347 = vmatpush1.bf16.msra.mxu0 0
        %348 = vmatprep.subr.bf16.mxu0 0
        %349 = vmatpush1.bf16.msra.mxu0 0
        %350 = vmatprep.subr.bf16.mxu0 0
        %351 = vmatpush1.bf16.msra.mxu0 0
        %352 = vmatprep.subr.bf16.mxu0 0
        %353 = vmatpush1.bf16.msra.mxu0 0
        %354 = vmatprep.subr.bf16.mxu0 0
        %355 = vmatpush1.bf16.msra.mxu0 0
        %356 = vmatprep.subr.bf16.mxu0 0
        %357 = vmatpush1.bf16.msra.mxu0 0
        %358 = vmatprep.subr.bf16.mxu0 0
        %359 = vmatpush1.bf16.msra.mxu0 0
        %360 = vmatprep.mubr.bf16.mxu0 0
        %361 = vmatmul.mubr.bf16.gmra.mrb[0].mxu0 %v323
        %v362 = vpop.f32.mrb[0].mxu0
        %v363 = vadd.f32 0.0, %v362
        %v364 = vpop.f32.mrb[0].mxu0
        %v365 = vpop.f32.mrb[0].mxu0
        %v366 = vadd.f32 0.0, %v365
        %v367 = vpop.f32.mrb[0].mxu0
        %368 = vmatprep.mubr.bf16.mxu0 0
        %369 = vmatmul.mubr.bf16.gmra.mrb[0].mxu0 %v326
        %v370 = vpop.f32.mrb[0].mxu0
        %v371 = vadd.f32 0.0, %v370
        %v372 = vpop.f32.mrb[0].mxu0
        %v373 = vpop.f32.mrb[0].mxu0
        %v374 = vadd.f32 0.0, %v373
        %v375 = vpop.f32.mrb[0].mxu0
        %376 = vdwg.mxu0
        %s377 = sld [smem:[#allocation2 + $0x80]]
        %v378 = vstv %s377
        %v379 = vmul.f32 %v241, %v378
        %v380 = vmul.f32 %v242, %v378
        %s381 = sld [smem:[#allocation2 + $0x81]]
        %v382 = vstv %s381
        %v383 = vmul.f32 %v244, %v382
        %v384 = vmul.f32 %v245, %v382
        %v385 = vadd.f32 %v379, %v383
        %v386 = vadd.f32 %v380, %v384
        %s387 = sld [smem:[#allocation2 + $0x82]]
        %v388 = vstv %s387
        %v389 = vmul.f32 %v247, %v388
        %v390 = vmul.f32 %v248, %v388
        %v391 = vadd.f32 %v385, %v389
        %v392 = vadd.f32 %v386, %v390
        %s393 = sld [smem:[#allocation2 + $0x83]]
        %v394 = vstv %s393
        %v395 = vmul.f32 %v250, %v394
        %v396 = vmul.f32 %v251, %v394
        %v397 = vadd.f32 %v391, %v395
        %v398 = vadd.f32 %v392, %v396
        %s399 = sld [smem:[#allocation2 + $0x84]]
        %v400 = vstv %s399
        %v401 = vmul.f32 %v253, %v400
        %v402 = vmul.f32 %v254, %v400
        %v403 = vadd.f32 %v397, %v401
        %v404 = vadd.f32 %v398, %v402
        %s405 = sld [smem:[#allocation2 + $0x85]]
        %v406 = vstv %s405
        %v407 = vmul.f32 %v256, %v406
        %v408 = vmul.f32 %v257, %v406
        %v409 = vadd.f32 %v403, %v407
        %v410 = vadd.f32 %v404, %v408
        %s411 = sld [smem:[#allocation2 + $0x86]]
        %v412 = vstv %s411
        %v413 = vmul.f32 %v259, %v412
        %v414 = vmul.f32 %v260, %v412
        %v415 = vadd.f32 %v409, %v413
        %v416 = vadd.f32 %v410, %v414
        %s417 = sld [smem:[#allocation2 + $0x87]]
        %v418 = vstv %s417
        %v419 = vmul.f32 %v262, %v418
        %v420 = vmul.f32 %v263, %v418
        %v421 = vadd.f32 %v415, %v419
        %v422 = vadd.f32 %v416, %v420
        %v423 = vpack.c.bf16 %v422, %v421
        %424 = vmatprep.subr.bf16.mxu0 0
        %425 = vmatpush1.bf16.msra.mxu0 %v423
        %426 = vmatprep.subr.bf16.mxu0 0
        %427 = vmatpush1.bf16.msra.mxu0 0
        %428 = vmatprep.subr.bf16.mxu0 0
        %429 = vmatpush1.bf16.msra.mxu0 0
        %430 = vmatprep.subr.bf16.mxu0 0
        %431 = vmatpush1.bf16.msra.mxu0 0
        %432 = vmatprep.subr.bf16.mxu0 0
        %433 = vmatpush1.bf16.msra.mxu0 0
        %434 = vmatprep.subr.bf16.mxu0 0
        %435 = vmatpush1.bf16.msra.mxu0 0
        %436 = vmatprep.subr.bf16.mxu0 0
        %437 = vmatpush1.bf16.msra.mxu0 0
        %438 = vmatprep.subr.bf16.mxu0 0
        %439 = vmatpush1.bf16.msra.mxu0 0
        %440 = vmatprep.subr.bf16.mxu0 0
        %441 = vmatpush1.bf16.msra.mxu0 0
        %442 = vmatprep.subr.bf16.mxu0 0
        %443 = vmatpush1.bf16.msra.mxu0 0
        %444 = vmatprep.subr.bf16.mxu0 0
        %445 = vmatpush1.bf16.msra.mxu0 0
        %446 = vmatprep.subr.bf16.mxu0 0
        %447 = vmatpush1.bf16.msra.mxu0 0
        %448 = vmatprep.subr.bf16.mxu0 0
        %449 = vmatpush1.bf16.msra.mxu0 0
        %450 = vmatprep.subr.bf16.mxu0 0
        %451 = vmatpush1.bf16.msra.mxu0 0
        %452 = vmatprep.subr.bf16.mxu0 0
        %453 = vmatpush1.bf16.msra.mxu0 0
        %454 = vmatprep.subr.bf16.mxu0 0
        %455 = vmatpush1.bf16.msra.mxu0 0
        %456 = vmatprep.mubr.bf16.mxu0 0
        %457 = vmatmul.mubr.bf16.gmra.mrb[0].mxu0 %v323
        %v458 = vpop.f32.mrb[0].mxu0
        %v459 = vadd.f32 0.0, %v458
        %v460 = vpop.f32.mrb[0].mxu0
        %v461 = vpop.f32.mrb[0].mxu0
        %v462 = vadd.f32 0.0, %v461
        %v463 = vpop.f32.mrb[0].mxu0
        %464 = vmatprep.mubr.bf16.mxu0 0
        %465 = vmatmul.mubr.bf16.gmra.mrb[0].mxu0 %v326
        %v466 = vpop.f32.mrb[0].mxu0
        %v467 = vadd.f32 0.0, %v466
        %v468 = vpop.f32.mrb[0].mxu0
        %v469 = vpop.f32.mrb[0].mxu0
        %v470 = vadd.f32 0.0, %v469
        %v471 = vpop.f32.mrb[0].mxu0
        %472 = vdwg.mxu0
        %s473 = sld [smem:[#allocation2 + $0x100]]
        %v474 = vstv %s473
        %v475 = vmul.f32 %v241, %v474
        %v476 = vmul.f32 %v242, %v474
        %s477 = sld [smem:[#allocation2 + $0x101]]
        %v478 = vstv %s477
        %v479 = vmul.f32 %v244, %v478
        %v480 = vmul.f32 %v245, %v478
        %v481 = vadd.f32 %v475, %v479
        %v482 = vadd.f32 %v476, %v480
        %s483 = sld [smem:[#allocation2 + $0x102]]
        %v484 = vstv %s483
        %v485 = vmul.f32 %v247, %v484
        %v486 = vmul.f32 %v248, %v484
        %v487 = vadd.f32 %v481, %v485
        %v488 = vadd.f32 %v482, %v486
        %s489 = sld [smem:[#allocation2 + $0x103]]
        %v490 = vstv %s489
        %v491 = vmul.f32 %v250, %v490
        %v492 = vmul.f32 %v251, %v490
        %v493 = vadd.f32 %v487, %v491
        %v494 = vadd.f32 %v488, %v492
        %s495 = sld [smem:[#allocation2 + $0x104]]
        %v496 = vstv %s495
        %v497 = vmul.f32 %v253, %v496
        %v498 = vmul.f32 %v254, %v496
        %v499 = vadd.f32 %v493, %v497
        %v500 = vadd.f32 %v494, %v498
        %s501 = sld [smem:[#allocation2 + $0x105]]
        %v502 = vstv %s501
        %v503 = vmul.f32 %v256, %v502
        %v504 = vmul.f32 %v257, %v502
        %v505 = vadd.f32 %v499, %v503
        %v506 = vadd.f32 %v500, %v504
        %s507 = sld [smem:[#allocation2 + $0x106]]
        %v508 = vstv %s507
        %v509 = vmul.f32 %v259, %v508
        %v510 = vmul.f32 %v260, %v508
        %v511 = vadd.f32 %v505, %v509
        %v512 = vadd.f32 %v506, %v510
        %s513 = sld [smem:[#allocation2 + $0x107]]
        %v514 = vstv %s513
        %v515 = vmul.f32 %v262, %v514
        %v516 = vmul.f32 %v263, %v514
        %v517 = vadd.f32 %v511, %v515
        %v518 = vadd.f32 %v512, %v516
        %v519 = vpack.c.bf16 %v518, %v517
        %520 = vmatprep.subr.bf16.mxu0 0
        %521 = vmatpush1.bf16.msra.mxu0 %v519
        %522 = vmatprep.subr.bf16.mxu0 0
        %523 = vmatpush1.bf16.msra.mxu0 0
        %524 = vmatprep.subr.bf16.mxu0 0
        %525 = vmatpush1.bf16.msra.mxu0 0
        %526 = vmatprep.subr.bf16.mxu0 0
        %527 = vmatpush1.bf16.msra.mxu0 0
        %528 = vmatprep.subr.bf16.mxu0 0
        %529 = vmatpush1.bf16.msra.mxu0 0
        %530 = vmatprep.subr.bf16.mxu0 0
        %531 = vmatpush1.bf16.msra.mxu0 0
        %532 = vmatprep.subr.bf16.mxu0 0
        %533 = vmatpush1.bf16.msra.mxu0 0
        %534 = vmatprep.subr.bf16.mxu0 0
        %535 = vmatpush1.bf16.msra.mxu0 0
        %536 = vmatprep.subr.bf16.mxu0 0
        %537 = vmatpush1.bf16.msra.mxu0 0
        %538 = vmatprep.subr.bf16.mxu0 0
        %539 = vmatpush1.bf16.msra.mxu0 0
        %540 = vmatprep.subr.bf16.mxu0 0
        %541 = vmatpush1.bf16.msra.mxu0 0
        %542 = vmatprep.subr.bf16.mxu0 0
        %543 = vmatpush1.bf16.msra.mxu0 0
        %544 = vmatprep.subr.bf16.mxu0 0
        %545 = vmatpush1.bf16.msra.mxu0 0
        %546 = vmatprep.subr.bf16.mxu0 0
        %547 = vmatpush1.bf16.msra.mxu0 0
        %548 = vmatprep.subr.bf16.mxu0 0
        %549 = vmatpush1.bf16.msra.mxu0 0
        %550 = vmatprep.subr.bf16.mxu0 0
        %551 = vmatpush1.bf16.msra.mxu0 0
        %552 = vmatprep.mubr.bf16.mxu0 0
        %553 = vmatmul.mubr.bf16.gmra.mrb[0].mxu0 %v323
        %v554 = vpop.f32.mrb[0].mxu0
        %v555 = vadd.f32 0.0, %v554
        %v556 = vpop.f32.mrb[0].mxu0
        %v557 = vpop.f32.mrb[0].mxu0
        %v558 = vadd.f32 0.0, %v557
        %v559 = vpop.f32.mrb[0].mxu0
        %560 = vmatprep.mubr.bf16.mxu0 0
        %561 = vmatmul.mubr.bf16.gmra.mrb[0].mxu0 %v326
        %v562 = vpop.f32.mrb[0].mxu0
        %v563 = vadd.f32 0.0, %v562
        %v564 = vpop.f32.mrb[0].mxu0
        %v565 = vpop.f32.mrb[0].mxu0
        %v566 = vadd.f32 0.0, %v565
        %v567 = vpop.f32.mrb[0].mxu0
        %568 = vdwg.mxu0
        %s569 = sld [smem:[#allocation2 + $0x180]]
        %v570 = vstv %s569
        %v571 = vmul.f32 %v241, %v570
        %v572 = vmul.f32 %v242, %v570
        %s573 = sld [smem:[#allocation2 + $0x181]]
        %v574 = vstv %s573
        %v575 = vmul.f32 %v244, %v574
        %v576 = vmul.f32 %v245, %v574
        %v577 = vadd.f32 %v571, %v575
        %v578 = vadd.f32 %v572, %v576
        %s579 = sld [smem:[#allocation2 + $0x182]]
        %v580 = vstv %s579
        %v581 = vmul.f32 %v247, %v580
        %v582 = vmul.f32 %v248, %v580
        %v583 = vadd.f32 %v577, %v581
        %v584 = vadd.f32 %v578, %v582
        %s585 = sld [smem:[#allocation2 + $0x183]]
        %v586 = vstv %s585
        %v587 = vmul.f32 %v250, %v586
        %v588 = vmul.f32 %v251, %v586
        %v589 = vadd.f32 %v583, %v587
        %v590 = vadd.f32 %v584, %v588
        %s591 = sld [smem:[#allocation2 + $0x184]]
        %v592 = vstv %s591
        %v593 = vmul.f32 %v253, %v592
        %v594 = vmul.f32 %v254, %v592
        %v595 = vadd.f32 %v589, %v593
        %v596 = vadd.f32 %v590, %v594
        %s597 = sld [smem:[#allocation2 + $0x185]]
        %v598 = vstv %s597
        %v599 = vmul.f32 %v256, %v598
        %v600 = vmul.f32 %v257, %v598
        %v601 = vadd.f32 %v595, %v599
        %v602 = vadd.f32 %v596, %v600
        %s603 = sld [smem:[#allocation2 + $0x186]]
        %v604 = vstv %s603
        %v605 = vmul.f32 %v259, %v604
        %v606 = vmul.f32 %v260, %v604
        %v607 = vadd.f32 %v601, %v605
        %v608 = vadd.f32 %v602, %v606
        %s609 = sld [smem:[#allocation2 + $0x187]]
        %v610 = vstv %s609
        %v611 = vmul.f32 %v262, %v610
        %v612 = vmul.f32 %v263, %v610
        %v613 = vadd.f32 %v607, %v611
        %v614 = vadd.f32 %v608, %v612
        %v615 = vpack.c.bf16 %v614, %v613
        %616 = vmatprep.subr.bf16.mxu0 0
        %617 = vmatpush1.bf16.msra.mxu0 %v615
        %618 = vmatprep.subr.bf16.mxu0 0
        %619 = vmatpush1.bf16.msra.mxu0 0
        %620 = vmatprep.subr.bf16.mxu0 0
        %621 = vmatpush1.bf16.msra.mxu0 0
        %622 = vmatprep.subr.bf16.mxu0 0
        %623 = vmatpush1.bf16.msra.mxu0 0
        %624 = vmatprep.subr.bf16.mxu0 0
        %625 = vmatpush1.bf16.msra.mxu0 0
        %626 = vmatprep.subr.bf16.mxu0 0
        %627 = vmatpush1.bf16.msra.mxu0 0
        %628 = vmatprep.subr.bf16.mxu0 0
        %629 = vmatpush1.bf16.msra.mxu0 0
        %630 = vmatprep.subr.bf16.mxu0 0
        %631 = vmatpush1.bf16.msra.mxu0 0
        %632 = vmatprep.subr.bf16.mxu0 0
        %633 = vmatpush1.bf16.msra.mxu0 0
        %634 = vmatprep.subr.bf16.mxu0 0
        %635 = vmatpush1.bf16.msra.mxu0 0
        %636 = vmatprep.subr.bf16.mxu0 0
        %637 = vmatpush1.bf16.msra.mxu0 0
        %638 = vmatprep.subr.bf16.mxu0 0
        %639 = vmatpush1.bf16.msra.mxu0 0
        %640 = vmatprep.subr.bf16.mxu0 0
        %641 = vmatpush1.bf16.msra.mxu0 0
        %642 = vmatprep.subr.bf16.mxu0 0
        %643 = vmatpush1.bf16.msra.mxu0 0
        %644 = vmatprep.subr.bf16.mxu0 0
        %645 = vmatpush1.bf16.msra.mxu0 0
        %646 = vmatprep.subr.bf16.mxu0 0
        %647 = vmatpush1.bf16.msra.mxu0 0
        %648 = vmatprep.mubr.bf16.mxu0 0
        %649 = vmatmul.mubr.bf16.gmra.mrb[0].mxu0 %v323
        %v650 = vpop.f32.mrb[0].mxu0
        %v651 = vadd.f32 0.0, %v650
        %v652 = vpop.f32.mrb[0].mxu0
        %v653 = vpop.f32.mrb[0].mxu0
        %v654 = vadd.f32 0.0, %v653
        %v655 = vpop.f32.mrb[0].mxu0
        %656 = vmatprep.mubr.bf16.mxu0 0
        %657 = vmatmul.mubr.bf16.gmra.mrb[0].mxu0 %v326
        %v658 = vpop.f32.mrb[0].mxu0
        %v659 = vadd.f32 0.0, %v658
        %v660 = vpop.f32.mrb[0].mxu0
        %v661 = vpop.f32.mrb[0].mxu0
        %v662 = vadd.f32 0.0, %v661
        %v663 = vpop.f32.mrb[0].mxu0
        %664 = vdwg.mxu0
        %v665 = vpack.c.bf16 %v366, %v363
        %v666 = vpack.c.bf16 %v374, %v371
        %v667 = vpack.c.bf16 %v462, %v459
        %v668 = vpack.c.bf16 %v470, %v467
        %v669 = vpack.c.bf16 %v558, %v555
        %v670 = vpack.c.bf16 %v566, %v563
        %v671 = vpack.c.bf16 %v654, %v651
        %v672 = vpack.c.bf16 %v662, %v659
        %v681 = vunpack.c.l.b16 %v233
        %v682 = vunpack.c.l.b16 %v234
        %v683 = vunpack.c.l.b16 %v235
        %v684 = vunpack.c.l.b16 %v236
        %v685 = vunpack.c.l.b16 %v237
        %v686 = vunpack.c.l.b16 %v238
        %v687 = vunpack.c.l.b16 %v239
        %v688 = vunpack.c.l.b16 %v240
        %v689 = vpack.c.b16 %v682, %v681
        %v690 = vpack.c.b16 %v684, %v683
        %v691 = vpack.c.b16 %v686, %v685
        %v692 = vpack.c.b16 %v688, %v687
        %vm697 = vcmask 523264
        %v699 = vsel %vm697, %v665, 0
        %v702 = vsel %vm697, %v666, 0
        %v705 = vsel %vm697, %v667, 0
        %v708 = vsel %vm697, %v668, 0
        %v711 = vsel %vm697, %v669, 0
        %v714 = vsel %vm697, %v670, 0
        %v717 = vsel %vm697, %v671, 0
        %v720 = vsel %vm697, %v672, 0
        %722 = vmatprep.subr.bf16.mxu0 0
        %723 = vmatpush1.bf16.msra.mxu0 %v689
        %724 = vmatprep.subr.bf16.mxu0 0
        %725 = vmatpush1.bf16.msra.mxu0 %v690
        %726 = vmatprep.subr.bf16.mxu0 0
        %727 = vmatpush1.bf16.msra.mxu0 %v691
        %728 = vmatprep.subr.bf16.mxu0 0
        %729 = vmatpush1.bf16.msra.mxu0 %v692
        %730 = vmatprep.subr.bf16.mxu0 0
        %731 = vmatpush1.bf16.msra.mxu0 0
        %732 = vmatprep.subr.bf16.mxu0 0
        %733 = vmatpush1.bf16.msra.mxu0 0
        %734 = vmatprep.subr.bf16.mxu0 0
        %735 = vmatpush1.bf16.msra.mxu0 0
        %736 = vmatprep.subr.bf16.mxu0 0
        %737 = vmatpush1.bf16.msra.mxu0 0
        %738 = vmatprep.subr.bf16.mxu0 0
        %739 = vmatpush1.bf16.msra.mxu0 0
        %740 = vmatprep.subr.bf16.mxu0 0
        %741 = vmatpush1.bf16.msra.mxu0 0
        %742 = vmatprep.subr.bf16.mxu0 0
        %743 = vmatpush1.bf16.msra.mxu0 0
        %744 = vmatprep.subr.bf16.mxu0 0
        %745 = vmatpush1.bf16.msra.mxu0 0
        %746 = vmatprep.subr.bf16.mxu0 0
        %747 = vmatpush1.bf16.msra.mxu0 0
        %748 = vmatprep.subr.bf16.mxu0 0
        %749 = vmatpush1.bf16.msra.mxu0 0
        %750 = vmatprep.subr.bf16.mxu0 0
        %751 = vmatpush1.bf16.msra.mxu0 0
        %752 = vmatprep.subr.bf16.mxu0 0
        %753 = vmatpush1.bf16.msra.mxu0 0
        %754 = vmatprep.mubr.bf16.mxu0 0
        %755 = vmatmul.mubr.bf16.gmra.mrb[0].mxu0 %v699
        %v756 = vpop.f32.mrb[0].mxu0
        %v757 = vadd.f32 0.0, %v756
        %v758 = vpop.f32.mrb[0].mxu0
        %v759 = vpop.f32.mrb[0].mxu0
        %v760 = vadd.f32 0.0, %v759
        %v761 = vpop.f32.mrb[0].mxu0
        %762 = vmatprep.mubr.bf16.mxu0 0
        %763 = vmatmul.mubr.bf16.gmra.mrb[0].mxu0 %v702
        %v764 = vpop.f32.mrb[0].mxu0
        %v765 = vadd.f32 0.0, %v764
        %v766 = vpop.f32.mrb[0].mxu0
        %v767 = vpop.f32.mrb[0].mxu0
        %v768 = vadd.f32 0.0, %v767
        %v769 = vpop.f32.mrb[0].mxu0
        %770 = vmatprep.mubr.bf16.mxu0 0
        %771 = vmatmul.mubr.bf16.gmra.mrb[0].mxu0 %v705
        %v772 = vpop.f32.mrb[0].mxu0
        %v773 = vadd.f32 0.0, %v772
        %v774 = vpop.f32.mrb[0].mxu0
        %v775 = vpop.f32.mrb[0].mxu0
        %v776 = vadd.f32 0.0, %v775
        %v777 = vpop.f32.mrb[0].mxu0
        %778 = vmatprep.mubr.bf16.mxu0 0
        %779 = vmatmul.mubr.bf16.gmra.mrb[0].mxu0 %v708
        %v780 = vpop.f32.mrb[0].mxu0
        %v781 = vadd.f32 0.0, %v780
        %v782 = vpop.f32.mrb[0].mxu0
        %v783 = vpop.f32.mrb[0].mxu0
        %v784 = vadd.f32 0.0, %v783
        %v785 = vpop.f32.mrb[0].mxu0
        %786 = vmatprep.mubr.bf16.mxu0 0
        %787 = vmatmul.mubr.bf16.gmra.mrb[0].mxu0 %v711
        %v788 = vpop.f32.mrb[0].mxu0
        %v789 = vadd.f32 0.0, %v788
        %v790 = vpop.f32.mrb[0].mxu0
        %v791 = vpop.f32.mrb[0].mxu0
        %v792 = vadd.f32 0.0, %v791
        %v793 = vpop.f32.mrb[0].mxu0
        %794 = vmatprep.mubr.bf16.mxu0 0
        %795 = vmatmul.mubr.bf16.gmra.mrb[0].mxu0 %v714
        %v796 = vpop.f32.mrb[0].mxu0
        %v797 = vadd.f32 0.0, %v796
        %v798 = vpop.f32.mrb[0].mxu0
        %v799 = vpop.f32.mrb[0].mxu0
        %v800 = vadd.f32 0.0, %v799
        %v801 = vpop.f32.mrb[0].mxu0
        %802 = vmatprep.mubr.bf16.mxu0 0
        %803 = vmatmul.mubr.bf16.gmra.mrb[0].mxu0 %v717
        %v804 = vpop.f32.mrb[0].mxu0
        %v805 = vadd.f32 0.0, %v804
        %v806 = vpop.f32.mrb[0].mxu0
        %v807 = vpop.f32.mrb[0].mxu0
        %v808 = vadd.f32 0.0, %v807
        %v809 = vpop.f32.mrb[0].mxu0
        %810 = vmatprep.mubr.bf16.mxu0 0
        %811 = vmatmul.mubr.bf16.gmra.mrb[0].mxu0 %v720
        %v812 = vpop.f32.mrb[0].mxu0
        %v813 = vadd.f32 0.0, %v812
        %v814 = vpop.f32.mrb[0].mxu0
        %v815 = vpop.f32.mrb[0].mxu0
        %v816 = vadd.f32 0.0, %v815
        %v817 = vpop.f32.mrb[0].mxu0
        %818 = vdwg.mxu0
        %819 = vst [vmem:[%s227] sm:$0xff] %v757
        %820 = vst [vmem:[%s227 + $0x8] sm:$0xff] %v760
        %821 = vst [vmem:[%s227 + $0x10] sm:$0xff] %v765
        %822 = vst [vmem:[%s227 + $0x18] sm:$0xff] %v768
        %823 = vst [vmem:[%s227 + $0x20] sm:$0xff] %v773
        %824 = vst [vmem:[%s227 + $0x28] sm:$0xff] %v776
        %825 = vst [vmem:[%s227 + $0x30] sm:$0xff] %v781
        %826 = vst [vmem:[%s227 + $0x38] sm:$0xff] %v784
        %827 = vst [vmem:[%s227 + $0x40] sm:$0xff] %v789
        %828 = vst [vmem:[%s227 + $0x48] sm:$0xff] %v792
        %829 = vst [vmem:[%s227 + $0x50] sm:$0xff] %v797
        %830 = vst [vmem:[%s227 + $0x58] sm:$0xff] %v800
        %831 = vst [vmem:[%s227 + $0x60] sm:$0xff] %v805
        %832 = vst [vmem:[%s227 + $0x68] sm:$0xff] %v808
        %833 = vst [vmem:[%s227 + $0x70] sm:$0xff] %v813
        %834 = vst [vmem:[%s227 + $0x78] sm:$0xff] %v816
        %s835 = sand.u32 %s119, 1
        %s836 = scalar_lea.sflag [#allocation4], %s835
        %s837 = sand.u32 %s119, 1
        %s838 = smul.addr %s837, 128
        %s839 = scalar_lea.vmem [#allocation7], %s838
        // Predicated region
        $region45: #{tpu_custom_call.1} parent=35 // pred_check
          %p840 = pneg %p129
        $region46: #{tpu_custom_call.1} parent=35 // pred_check_branch
          %842 = sbr.rel (%p840) target = $region48
        $region47: #{tpu_custom_call.1} parent=35 // pred_region
          %s844 = ssub.s32 2048, 2048
          %845 = vsyncadd %s836, %s844
          %s846 = smul.addr %s22, 16
          %s847 = smul.addr %s846, 128
          %s848 = scalar_lea.hbm %s4, %s847
          %s849 = sshll.u32 %s839, 4
          %s850 = int_to_ptr.vmem [resolvable:$true] %s849
          %855 = dma.vmem_to_hbm [thread:$0]  %s850, 2048, %s848, %s836, 128, 128, 8
        $region48: #{tpu_custom_call.1} parent=35 // pred_fallthru
          _
      $region36: #{tpu_custom_call.1} parent=5 // pred_fallthru
        _
      %p856 = scmp.le.s32.totalorder 2, %s17
      // Predicated region
      $region49: #{tpu_custom_call.1} parent=5 // pred_check
        %p857 = pneg %p856
      $region50: #{tpu_custom_call.1} parent=5 // pred_check_branch
        %859 = sbr.rel (%p857) target = $region52
      $region51: #{tpu_custom_call.1} parent=5 // pred_region
        %s860 = ssub.s32 %s17, 2
        // Predicated region
        $region53: #{tpu_custom_call.1} parent=51 // pred_check
          %p861 = pneg %p135
        $region54: #{tpu_custom_call.1} parent=51 // pred_check_branch
          %863 = sbr.rel (%p861) target = $region56
        $region55: #{tpu_custom_call.1} parent=51 // pred_region
          %s864 = sand.u32 %s120, 1
          %s865 = scalar_lea.sflag [#allocation4], %s864
          %s866 = sand.u32 %s120, 1
          %s867 = smul.addr %s866, 128
          %s868 = scalar_lea.vmem [#allocation7], %s867
          %869 = dma.done %s865, 2048
        $region56: #{tpu_custom_call.1} parent=51 // pred_fallthru
          _
      $region52: #{tpu_custom_call.1} parent=5 // pred_fallthru
        _
    $region6: #{tpu_custom_call.1} parent=1 // loop_footer
      %s21 = sadd.s32 1, %s17
    $region7: #{tpu_custom_call.1} parent=1 // loop_footer_branch
      %16 = sbr.rel target = $region3
    $region8: #{tpu_custom_call.1} parent=1 // loop_exit
      _
    %870 = vsyncpa [#allocation3], 1
    %s871 = scalar_lea.sflag [#allocation3], 1
    %872 = vsyncpa %s871, 1
    %873 = vsyncpa [#allocation4], 1
    %s874 = scalar_lea.sflag [#allocation4], 1
    %875 = vsyncpa %s874, 1
    %876 = vsyncpa [#allocation5], 1
    %s877 = scalar_lea.sflag [#allocation5], 1
    %878 = vsyncpa %s877, 1

</llo_original>
